<compile_context>
chip_gen: v7x
topology: tpu7x:2x2x1
jax: 0.10.0
libtpu: 0.0.40
codegen_flags: <defaults>
</compile_context>

<pallas_src>
import functools

import jax
import jax.numpy as jnp
from jax.experimental import pallas as pl
from jax.experimental.pallas import tpu as pltpu

GLN_EPS = 1e-8   # GlobalChannelLayerNorm eps (matches the PyTorch module)
BN_EPS = 1e-5    # nn.BatchNorm2d default eps


# ----------------------------------------------------------------------------
# Pallas kernel: the entire MultiScaleConvBlock forward, channels x (N*H*W).
# ----------------------------------------------------------------------------
def _msc_kernel(
    x_ref,                         # (C, N*P) input
    w1_ref, b1_ref,                # conv1: (2C, C), (2C, 1)
    g1e_ref,                       # GLN1 gamma * depthwise scale (2C, 1)
    bg1_ref, bb1_ref,              # bn_depth gamma/beta (2C, 1)
    wp_ref,                        # pointwise conv (2C, 2C)
    bg2_ref, bb2_ref,              # bn_point gamma/beta (2C, 1)
    w5e_ref, b5e_ref,              # conv5 with GLN2 folded in: (C, 2C), (C, 1)
    g3_ref, be3_ref,               # GLN3 gamma/beta (C, 1)
    out_ref,                       # (C, N*P)
    *, n, p,
):
    def gln_rows(y):
        # GlobalChannelLayerNorm stats: per-sample mean/var over (channels, pixels).
        # Samples are contiguous p-lane blocks (p is a multiple of 128) -> static,
        # lane-aligned slices unrolled over N. Only tiny (1, p) rows are built;
        # the apply over the full tensor happens once, fused, in the caller.
        cdim = y.shape[0]
        inv = 1.0 / float(cdim * p)
        scale_rows, shift_rows = [], []
        for i in range(n):
            yi = y[:, i * p:(i + 1) * p]
            s = jnp.sum(yi, keepdims=True)            # (1, 1) one-pass stats
            ss = jnp.sum(yi * yi, keepdims=True)      # (1, 1)
            mean = s * inv
            var = ss * inv - mean * mean
            rstd = jax.lax.rsqrt(var + GLN_EPS)
            scale_rows.append(jnp.broadcast_to(rstd, (1, p)))
            shift_rows.append(jnp.broadcast_to(mean * rstd, (1, p)))
        scale_row = jnp.concatenate(scale_rows, axis=1)   # (1, N*P)
        shift_row = jnp.concatenate(shift_rows, axis=1)   # (1, N*P)
        return scale_row, shift_row

    def bn_relu(y, gamma, beta):
        # BatchNorm2d (training mode: biased batch stats over all N*H*W lanes)
        # + ReLU, folded to one multiply-add over the full tensor.
        inv = 1.0 / float(y.shape[1])
        s = jnp.sum(y, axis=1, keepdims=True)         # (C, 1)
        ss = jnp.sum(y * y, axis=1, keepdims=True)    # (C, 1)
        mean = s * inv
        var = ss * inv - mean * mean                  # biased variance, like PyTorch
        a = gamma * jax.lax.rsqrt(var + BN_EPS)       # (C, 1)
        b = beta - a * mean                           # (C, 1)
        return jnp.maximum(y * a + b, 0.0)

    x = x_ref[...]

    # 1) Conv2d(C -> 2C, 1x1)   == matmul over channels (MXU)
    y = jnp.dot(w1_ref[...], x, preferred_element_type=jnp.float32) + b1_ref[...]
    # 2) GLN(2C); depthwise 1x1 diagonal scale is folded into gamma. GLN1 beta,
    #    depthwise bias and pointwise bias are exact no-ops before a training-mode
    #    BatchNorm and are dropped from the kernel (kept in the reference).
    scale_row, shift_row = gln_rows(y)
    y = g1e_ref[...] * (y * scale_row - shift_row)
    # 3) bn_depth + ReLU, pointwise 1x1, bn_point + ReLU
    y = bn_relu(y, bg1_ref[...], bb1_ref[...])
    y = jnp.dot(wp_ref[...], y, preferred_element_type=jnp.float32)
    y = bn_relu(y, bg2_ref[...], bb2_ref[...])
    # 4) GLN(2C): gamma/beta folded into conv5 weight/bias -> apply normed only.
    scale_row, shift_row = gln_rows(y)
    y = y * scale_row - shift_row
    # 5) Conv2d(2C -> C, 1x1) with GLN2 gamma folded into columns, beta into bias.
    y = jnp.dot(w5e_ref[...], y, preferred_element_type=jnp.float32) + b5e_ref[...]
    # 6) GLN(C)
    scale_row, shift_row = gln_rows(y)
    out_ref[...] = g3_ref[...] * (y * scale_row - shift_row) + be3_ref[...]


# ----------------------------------------------------------------------------
# Wrapper: layout plumbing (NCHW -> (C, N*HW)) + weight folds + pallas_call.
# ----------------------------------------------------------------------------
@jax.jit
def multi_scale_conv_block(x, params):
    n, c, h, w = x.shape
    p = h * w
    c2 = 2 * c

    # NCHW -> (C, N, H*W) -> (C, N*H*W): channels on sublanes, pixels on lanes.
    x2 = jnp.transpose(x, (1, 0, 2, 3)).reshape(c, n * p).astype(jnp.float32)

    col = lambda v: v.reshape(-1, 1).astype(jnp.float32)
    mat = lambda v: v[:, :, 0, 0].astype(jnp.float32)          # (O, I, 1, 1) -> (O, I)

    w1 = mat(params["w1"])
    b1 = col(params["b1"])
    # Depthwise 1x1 (groups=channels) diagonal scale folded into GLN1 gamma.
    g1e = col(params["wd"][:, 0, 0, 0].astype(jnp.float32) *
              params["gln1_g"].astype(jnp.float32))
    wp = mat(params["wp"])
    # GLN2 gamma folded into conv5 columns, GLN2 beta folded into conv5 bias.
    w5 = mat(params["w5"])
    g2 = params["gln2_g"].astype(jnp.float32)
    be2 = params["gln2_b"].astype(jnp.float32)
    w5e = w5 * g2[None, :]
    b5e = col(params["b5"].astype(jnp.float32) + w5 @ be2)

    kernel_inputs = (
        x2,
        w1, b1,
        g1e,
        col(params["bn1_g"]), col(params["bn1_b"]),
        wp,
        col(params["bn2_g"]), col(params["bn2_b"]),
        w5e, b5e,
        col(params["gln3_g"]), col(params["gln3_b"]),
    )

    matmul_flops = 2 * n * p * (c2 * c + c2 * c2 + c * c2)
    elementwise_flops = 30 * c2 * n * p
    bytes_accessed = 4 * (2 * c * n * p + c2 * c + c2 * c2 + c * c2 + 10 * c2)

    vmem = pl.BlockSpec(memory_space=pltpu.MemorySpace.VMEM)

    out2 = pl.pallas_call(
        functools.partial(_msc_kernel, n=n, p=p),
        out_shape=jax.ShapeDtypeStruct((c, n * p), jnp.float32),
        in_specs=[vmem] * len(kernel_inputs),
        out_specs=vmem,
        compiler_params=pltpu.CompilerParams(vmem_limit_bytes=32 * 1024 * 1024),
        cost_estimate=pl.CostEstimate(
            flops=int(matmul_flops + elementwise_flops),
            transcendentals=int(3 * n + 2 * c2),
            bytes_accessed=int(bytes_accessed),
        ),
    )(*kernel_inputs)

    # (C, N*P) -> (C, N, H, W) -> (N, C, H, W)
    return jnp.transpose(out2.reshape(c, n, h, w), (1, 0, 2, 3))


# ----------------------------------------------------------------------------
# Pure-JAX reference mirroring the PyTorch forward exactly (incl. all biases).
# ----------------------------------------------------------------------------
def _reference(x, params):
    n, c, h, w = x.shape
    hw = h * w

    def conv1x1(t, wgt, b):                  # t: (N, Ci, HW)
        return jnp.einsum("oi,nip->nop", wgt[:, :, 0, 0], t) + b[None, :, None]

    def gln(t, g, b):
        mean = t.mean(axis=(1, 2), keepdims=True)
        var = ((t - mean) ** 2).mean(axis=(1, 2), keepdims=True)
        y = (t - mean) / jnp.sqrt(var + GLN_EPS)
        return g[None, :, None] * y + b[None, :, None]

    def bn(t, g, b):
        mean = t.mean(axis=(0, 2), keepdims=True)
        var = ((t - mean) ** 2).mean(axis=(0, 2), keepdims=True)
        return g[None, :, None] * (t - mean) / jnp.sqrt(var + BN_EPS) + b[None, :, None]

    t = x.reshape(n, c, hw)
    t = conv1x1(t, params["w1"], params["b1"])
    t = gln(t, params["gln1_g"], params["gln1_b"])
    # DepthwiseSeparableConv2d (kernel_size=1, groups=channels) with its biases.
    t = t * params["wd"][:, 0, 0, 0][None, :, None] + params["bd"][None, :, None]
    t = bn(t, params["bn1_g"], params["bn1_b"])
    t = jax.nn.relu(t)
    t = conv1x1(t, params["wp"], params["bp"])
    t = bn(t, params["bn2_g"], params["bn2_b"])
    t = jax.nn.relu(t)
    t = gln(t, params["gln2_g"], params["gln2_b"])
    t = conv1x1(t, params["w5"], params["b5"])
    t = gln(t, params["gln3_g"], params["gln3_b"])
    return t.reshape(n, c, h, w)


# ----------------------------------------------------------------------------
# Deterministic parameter construction (shapes per the module's __init__).
# ----------------------------------------------------------------------------
def make_params(key, c):
    c2 = 2 * c
    ks = jax.random.split(key, 16)
    nrm = lambda k, shape, scale: scale * jax.random.normal(k, shape, jnp.float32)
    return {
        "w1": nrm(ks[0], (c2, c, 1, 1), 1.0 / float(c) ** 0.5),
        "b1": nrm(ks[1], (c2,), 0.1),
        "gln1_g": 1.0 + nrm(ks[2], (c2,), 0.1),
        "gln1_b": nrm(ks[3], (c2,), 0.1),
        "wd": nrm(ks[4], (c2, 1, 1, 1), 1.0),
        "bd": nrm(ks[5], (c2,), 0.1),
        "bn1_g": 1.0 + nrm(ks[6], (c2,), 0.1),
        "bn1_b": nrm(ks[7], (c2,), 0.1),
        "wp": nrm(ks[8], (c2, c2, 1, 1), 1.0 / float(c2) ** 0.5),
        "bp": nrm(ks[9], (c2,), 0.1),
        "bn2_g": 1.0 + nrm(ks[10], (c2,), 0.1),
        "bn2_b": nrm(ks[11], (c2,), 0.1),
        "gln2_g": 1.0 + nrm(ks[12], (c2,), 0.1),
        "gln2_b": nrm(ks[13], (c2,), 0.1),
        "w5": nrm(ks[14], (c, c2, 1, 1), 1.0 / float(c2) ** 0.5),
        "b5": nrm(ks[15], (c,), 0.1),
        "gln3_g": 1.0 + nrm(jax.random.fold_in(key, 100), (c,), 0.1),
        "gln3_b": nrm(jax.random.fold_in(key, 101), (c,), 0.1),
    }


if __name__ == "__main__":
    N, C, H, W = 2, 4, 16, 16

    key = jax.random.PRNGKey(0)
    kx, kp = jax.random.split(key)
    x = jax.random.normal(kx, (N, C, H, W), jnp.float32)
    params = make_params(kp, C)

    out = jax.block_until_ready(multi_scale_conv_block(x, params))
    assert out.shape == (N, C, H, W), out.shape

    ref = jax.block_until_ready(jax.jit(_reference)(x, params))
    assert ref.shape == out.shape, (out.shape, ref.shape)
    max_err = float(jnp.max(jnp.abs(out - ref)))
    assert jnp.allclose(out, ref, atol=5e-3, rtol=5e-3), max_err

    print("KERNEL_OK")
</pallas_src>

<mosaic_0001>
module attributes {stable_mosaic.version = 11 : i64} {
  func.func @_msc_kernel(%arg0: memref<4x512xf32, #tpu.memory_space<vmem>>, %arg1: memref<8x4xf32, #tpu.memory_space<vmem>>, %arg2: memref<8x1xf32, #tpu.memory_space<vmem>>, %arg3: memref<8x1xf32, #tpu.memory_space<vmem>>, %arg4: memref<8x1xf32, #tpu.memory_space<vmem>>, %arg5: memref<8x1xf32, #tpu.memory_space<vmem>>, %arg6: memref<8x8xf32, #tpu.memory_space<vmem>>, %arg7: memref<8x1xf32, #tpu.memory_space<vmem>>, %arg8: memref<8x1xf32, #tpu.memory_space<vmem>>, %arg9: memref<4x8xf32, #tpu.memory_space<vmem>>, %arg10: memref<4x1xf32, #tpu.memory_space<vmem>>, %arg11: memref<4x1xf32, #tpu.memory_space<vmem>>, %arg12: memref<4x1xf32, #tpu.memory_space<vmem>>, %arg13: memref<4x512xf32, #tpu.memory_space<vmem>>) attributes {dimension_semantics = [], scalar_prefetch = 0 : i64, scratch_operands = 0 : i64, tpu.core_type = #tpu.core_type<tc>} {
    %c0 = arith.constant 0 : index
    %c0_0 = arith.constant 0 : index
    %0 = vector.load %arg0[%c0, %c0_0] : memref<4x512xf32, #tpu.memory_space<vmem>>, vector<4x512xf32>
    %c0_1 = arith.constant 0 : index
    %c0_2 = arith.constant 0 : index
    %1 = vector.load %arg1[%c0_1, %c0_2] : memref<8x4xf32, #tpu.memory_space<vmem>>, vector<8x4xf32>
    %cst = arith.constant dense<0.000000e+00> : vector<8x512xf32>
    %2 = tpu.matmul %1, %0, %cst {dimension_numbers = #tpu.dot_dimension_numbers<[1], [0], [0], [1], [0, 0, 1, 1], [], []>} : vector<8x4xf32>, vector<4x512xf32>, vector<8x512xf32> -> vector<8x512xf32>
    %c0_3 = arith.constant 0 : index
    %c0_4 = arith.constant 0 : index
    %3 = vector.load %arg2[%c0_3, %c0_4] : memref<8x1xf32, #tpu.memory_space<vmem>>, vector<8x1xf32>
    %4 = vector.broadcast %3 : vector<8x1xf32> to vector<8x512xf32>
    %5 = arith.addf %2, %4 : vector<8x512xf32>
    %6 = vector.extract_strided_slice %5 {offsets = [0, 0], sizes = [8, 256], strides = [1, 1]} : vector<8x512xf32> to vector<8x256xf32>
    %7 = vector.shape_cast %6 : vector<8x256xf32> to vector<1x8x256xf32>
    %cst_5 = arith.constant dense<0.000000e+00> : vector<1xf32>
    %8 = vector.multi_reduction <add>, %7, %cst_5 [1, 2] : vector<1x8x256xf32> to vector<1xf32>
    %9 = vector.shape_cast %8 : vector<1xf32> to vector<1x1x1xf32>
    %10 = vector.extract %9[0, 0, 0] : f32 from vector<1x1x1xf32>
    %11 = vector.broadcast %10 : f32 to vector<1x1xf32>
    %12 = arith.mulf %6, %6 : vector<8x256xf32>
    %13 = vector.shape_cast %12 : vector<8x256xf32> to vector<1x8x256xf32>
    %cst_6 = arith.constant dense<0.000000e+00> : vector<1xf32>
    %14 = vector.multi_reduction <add>, %13, %cst_6 [1, 2] : vector<1x8x256xf32> to vector<1xf32>
    %15 = vector.shape_cast %14 : vector<1xf32> to vector<1x1x1xf32>
    %16 = vector.extract %15[0, 0, 0] : f32 from vector<1x1x1xf32>
    %17 = vector.broadcast %16 : f32 to vector<1x1xf32>
    %cst_7 = arith.constant 4.8828125E-4 : f32
    %18 = vector.broadcast %cst_7 : f32 to vector<1x1xf32>
    %19 = arith.mulf %11, %18 : vector<1x1xf32>
    %cst_8 = arith.constant 4.8828125E-4 : f32
    %20 = vector.broadcast %cst_8 : f32 to vector<1x1xf32>
    %21 = arith.mulf %17, %20 : vector<1x1xf32>
    %22 = arith.mulf %19, %19 : vector<1x1xf32>
    %23 = arith.subf %21, %22 : vector<1x1xf32>
    %cst_9 = arith.constant 9.99999993E-9 : f32
    %24 = vector.broadcast %cst_9 : f32 to vector<1x1xf32>
    %25 = arith.addf %23, %24 : vector<1x1xf32>
    %26 = math.rsqrt %25 : vector<1x1xf32>
    %27 = vector.shape_cast %26 : vector<1x1xf32> to vector<1x1xf32>
    %28 = vector.broadcast %27 : vector<1x1xf32> to vector<1x256xf32>
    %29 = arith.mulf %19, %26 : vector<1x1xf32>
    %30 = vector.shape_cast %29 : vector<1x1xf32> to vector<1x1xf32>
    %31 = vector.broadcast %30 : vector<1x1xf32> to vector<1x256xf32>
    %32 = vector.extract_strided_slice %5 {offsets = [0, 256], sizes = [8, 256], strides = [1, 1]} : vector<8x512xf32> to vector<8x256xf32>
    %33 = vector.shape_cast %32 : vector<8x256xf32> to vector<1x8x256xf32>
    %cst_10 = arith.constant dense<0.000000e+00> : vector<1xf32>
    %34 = vector.multi_reduction <add>, %33, %cst_10 [1, 2] : vector<1x8x256xf32> to vector<1xf32>
    %35 = vector.shape_cast %34 : vector<1xf32> to vector<1x1x1xf32>
    %36 = vector.extract %35[0, 0, 0] : f32 from vector<1x1x1xf32>
    %37 = vector.broadcast %36 : f32 to vector<1x1xf32>
    %38 = arith.mulf %32, %32 : vector<8x256xf32>
    %39 = vector.shape_cast %38 : vector<8x256xf32> to vector<1x8x256xf32>
    %cst_11 = arith.constant dense<0.000000e+00> : vector<1xf32>
    %40 = vector.multi_reduction <add>, %39, %cst_11 [1, 2] : vector<1x8x256xf32> to vector<1xf32>
    %41 = vector.shape_cast %40 : vector<1xf32> to vector<1x1x1xf32>
    %42 = vector.extract %41[0, 0, 0] : f32 from vector<1x1x1xf32>
    %43 = vector.broadcast %42 : f32 to vector<1x1xf32>
    %cst_12 = arith.constant 4.8828125E-4 : f32
    %44 = vector.broadcast %cst_12 : f32 to vector<1x1xf32>
    %45 = arith.mulf %37, %44 : vector<1x1xf32>
    %cst_13 = arith.constant 4.8828125E-4 : f32
    %46 = vector.broadcast %cst_13 : f32 to vector<1x1xf32>
    %47 = arith.mulf %43, %46 : vector<1x1xf32>
    %48 = arith.mulf %45, %45 : vector<1x1xf32>
    %49 = arith.subf %47, %48 : vector<1x1xf32>
    %cst_14 = arith.constant 9.99999993E-9 : f32
    %50 = vector.broadcast %cst_14 : f32 to vector<1x1xf32>
    %51 = arith.addf %49, %50 : vector<1x1xf32>
    %52 = math.rsqrt %51 : vector<1x1xf32>
    %53 = vector.shape_cast %52 : vector<1x1xf32> to vector<1x1xf32>
    %54 = vector.broadcast %53 : vector<1x1xf32> to vector<1x256xf32>
    %55 = arith.mulf %45, %52 : vector<1x1xf32>
    %56 = vector.shape_cast %55 : vector<1x1xf32> to vector<1x1xf32>
    %57 = vector.broadcast %56 : vector<1x1xf32> to vector<1x256xf32>
    %58 = tpu.concatenate %28, %54 in 1 : vector<1x256xf32>, vector<1x256xf32> -> vector<1x512xf32>
    %59 = tpu.concatenate %31, %57 in 1 : vector<1x256xf32>, vector<1x256xf32> -> vector<1x512xf32>
    %c0_15 = arith.constant 0 : index
    %c0_16 = arith.constant 0 : index
    %60 = vector.load %arg3[%c0_15, %c0_16] : memref<8x1xf32, #tpu.memory_space<vmem>>, vector<8x1xf32>
    %61 = vector.broadcast %58 : vector<1x512xf32> to vector<8x512xf32>
    %62 = arith.mulf %5, %61 : vector<8x512xf32>
    %63 = vector.broadcast %59 : vector<1x512xf32> to vector<8x512xf32>
    %64 = arith.subf %62, %63 : vector<8x512xf32>
    %65 = vector.broadcast %60 : vector<8x1xf32> to vector<8x512xf32>
    %66 = arith.mulf %65, %64 : vector<8x512xf32>
    %c0_17 = arith.constant 0 : index
    %c0_18 = arith.constant 0 : index
    %67 = vector.load %arg4[%c0_17, %c0_18] : memref<8x1xf32, #tpu.memory_space<vmem>>, vector<8x1xf32>
    %c0_19 = arith.constant 0 : index
    %c0_20 = arith.constant 0 : index
    %68 = vector.load %arg5[%c0_19, %c0_20] : memref<8x1xf32, #tpu.memory_space<vmem>>, vector<8x1xf32>
    %cst_21 = arith.constant dense<0.000000e+00> : vector<8xf32>
    %69 = vector.multi_reduction <add>, %66, %cst_21 [1] : vector<8x512xf32> to vector<8xf32>
    %70 = vector.shape_cast %69 : vector<8xf32> to vector<8x1xf32>
    %71 = arith.mulf %66, %66 : vector<8x512xf32>
    %cst_22 = arith.constant dense<0.000000e+00> : vector<8xf32>
    %72 = vector.multi_reduction <add>, %71, %cst_22 [1] : vector<8x512xf32> to vector<8xf32>
    %73 = vector.shape_cast %72 : vector<8xf32> to vector<8x1xf32>
    %cst_23 = arith.constant 0.001953125 : f32
    %74 = vector.broadcast %cst_23 : f32 to vector<8x1xf32>
    %75 = arith.mulf %70, %74 : vector<8x1xf32>
    %cst_24 = arith.constant 0.001953125 : f32
    %76 = vector.broadcast %cst_24 : f32 to vector<8x1xf32>
    %77 = arith.mulf %73, %76 : vector<8x1xf32>
    %78 = arith.mulf %75, %75 : vector<8x1xf32>
    %79 = arith.subf %77, %78 : vector<8x1xf32>
    %cst_25 = arith.constant 9.99999974E-6 : f32
    %80 = vector.broadcast %cst_25 : f32 to vector<8x1xf32>
    %81 = arith.addf %79, %80 : vector<8x1xf32>
    %82 = math.rsqrt %81 : vector<8x1xf32>
    %83 = arith.mulf %67, %82 : vector<8x1xf32>
    %84 = arith.mulf %83, %75 : vector<8x1xf32>
    %85 = arith.subf %68, %84 : vector<8x1xf32>
    %86 = vector.broadcast %83 : vector<8x1xf32> to vector<8x512xf32>
    %87 = arith.mulf %66, %86 : vector<8x512xf32>
    %88 = vector.broadcast %85 : vector<8x1xf32> to vector<8x512xf32>
    %89 = arith.addf %87, %88 : vector<8x512xf32>
    %cst_26 = arith.constant 0.000000e+00 : f32
    %90 = vector.broadcast %cst_26 : f32 to vector<8x512xf32>
    %91 = arith.maximumf %89, %90 : vector<8x512xf32>
    %c0_27 = arith.constant 0 : index
    %c0_28 = arith.constant 0 : index
    %92 = vector.load %arg6[%c0_27, %c0_28] : memref<8x8xf32, #tpu.memory_space<vmem>>, vector<8x8xf32>
    %cst_29 = arith.constant dense<0.000000e+00> : vector<8x512xf32>
    %93 = tpu.matmul %92, %91, %cst_29 {dimension_numbers = #tpu.dot_dimension_numbers<[1], [0], [0], [1], [0, 0, 1, 1], [], []>} : vector<8x8xf32>, vector<8x512xf32>, vector<8x512xf32> -> vector<8x512xf32>
    %c0_30 = arith.constant 0 : index
    %c0_31 = arith.constant 0 : index
    %94 = vector.load %arg7[%c0_30, %c0_31] : memref<8x1xf32, #tpu.memory_space<vmem>>, vector<8x1xf32>
    %c0_32 = arith.constant 0 : index
    %c0_33 = arith.constant 0 : index
    %95 = vector.load %arg8[%c0_32, %c0_33] : memref<8x1xf32, #tpu.memory_space<vmem>>, vector<8x1xf32>
    %cst_34 = arith.constant dense<0.000000e+00> : vector<8xf32>
    %96 = vector.multi_reduction <add>, %93, %cst_34 [1] : vector<8x512xf32> to vector<8xf32>
    %97 = vector.shape_cast %96 : vector<8xf32> to vector<8x1xf32>
    %98 = arith.mulf %93, %93 : vector<8x512xf32>
    %cst_35 = arith.constant dense<0.000000e+00> : vector<8xf32>
    %99 = vector.multi_reduction <add>, %98, %cst_35 [1] : vector<8x512xf32> to vector<8xf32>
    %100 = vector.shape_cast %99 : vector<8xf32> to vector<8x1xf32>
    %cst_36 = arith.constant 0.001953125 : f32
    %101 = vector.broadcast %cst_36 : f32 to vector<8x1xf32>
    %102 = arith.mulf %97, %101 : vector<8x1xf32>
    %cst_37 = arith.constant 0.001953125 : f32
    %103 = vector.broadcast %cst_37 : f32 to vector<8x1xf32>
    %104 = arith.mulf %100, %103 : vector<8x1xf32>
    %105 = arith.mulf %102, %102 : vector<8x1xf32>
    %106 = arith.subf %104, %105 : vector<8x1xf32>
    %cst_38 = arith.constant 9.99999974E-6 : f32
    %107 = vector.broadcast %cst_38 : f32 to vector<8x1xf32>
    %108 = arith.addf %106, %107 : vector<8x1xf32>
    %109 = math.rsqrt %108 : vector<8x1xf32>
    %110 = arith.mulf %94, %109 : vector<8x1xf32>
    %111 = arith.mulf %110, %102 : vector<8x1xf32>
    %112 = arith.subf %95, %111 : vector<8x1xf32>
    %113 = vector.broadcast %110 : vector<8x1xf32> to vector<8x512xf32>
    %114 = arith.mulf %93, %113 : vector<8x512xf32>
    %115 = vector.broadcast %112 : vector<8x1xf32> to vector<8x512xf32>
    %116 = arith.addf %114, %115 : vector<8x512xf32>
    %cst_39 = arith.constant 0.000000e+00 : f32
    %117 = vector.broadcast %cst_39 : f32 to vector<8x512xf32>
    %118 = arith.maximumf %116, %117 : vector<8x512xf32>
    %119 = vector.extract_strided_slice %118 {offsets = [0, 0], sizes = [8, 256], strides = [1, 1]} : vector<8x512xf32> to vector<8x256xf32>
    %120 = vector.shape_cast %119 : vector<8x256xf32> to vector<1x8x256xf32>
    %cst_40 = arith.constant dense<0.000000e+00> : vector<1xf32>
    %121 = vector.multi_reduction <add>, %120, %cst_40 [1, 2] : vector<1x8x256xf32> to vector<1xf32>
    %122 = vector.shape_cast %121 : vector<1xf32> to vector<1x1x1xf32>
    %123 = vector.extract %122[0, 0, 0] : f32 from vector<1x1x1xf32>
    %124 = vector.broadcast %123 : f32 to vector<1x1xf32>
    %125 = arith.mulf %119, %119 : vector<8x256xf32>
    %126 = vector.shape_cast %125 : vector<8x256xf32> to vector<1x8x256xf32>
    %cst_41 = arith.constant dense<0.000000e+00> : vector<1xf32>
    %127 = vector.multi_reduction <add>, %126, %cst_41 [1, 2] : vector<1x8x256xf32> to vector<1xf32>
    %128 = vector.shape_cast %127 : vector<1xf32> to vector<1x1x1xf32>
    %129 = vector.extract %128[0, 0, 0] : f32 from vector<1x1x1xf32>
    %130 = vector.broadcast %129 : f32 to vector<1x1xf32>
    %cst_42 = arith.constant 4.8828125E-4 : f32
    %131 = vector.broadcast %cst_42 : f32 to vector<1x1xf32>
    %132 = arith.mulf %124, %131 : vector<1x1xf32>
    %cst_43 = arith.constant 4.8828125E-4 : f32
    %133 = vector.broadcast %cst_43 : f32 to vector<1x1xf32>
    %134 = arith.mulf %130, %133 : vector<1x1xf32>
    %135 = arith.mulf %132, %132 : vector<1x1xf32>
    %136 = arith.subf %134, %135 : vector<1x1xf32>
    %cst_44 = arith.constant 9.99999993E-9 : f32
    %137 = vector.broadcast %cst_44 : f32 to vector<1x1xf32>
    %138 = arith.addf %136, %137 : vector<1x1xf32>
    %139 = math.rsqrt %138 : vector<1x1xf32>
    %140 = vector.shape_cast %139 : vector<1x1xf32> to vector<1x1xf32>
    %141 = vector.broadcast %140 : vector<1x1xf32> to vector<1x256xf32>
    %142 = arith.mulf %132, %139 : vector<1x1xf32>
    %143 = vector.shape_cast %142 : vector<1x1xf32> to vector<1x1xf32>
    %144 = vector.broadcast %143 : vector<1x1xf32> to vector<1x256xf32>
    %145 = vector.extract_strided_slice %118 {offsets = [0, 256], sizes = [8, 256], strides = [1, 1]} : vector<8x512xf32> to vector<8x256xf32>
    %146 = vector.shape_cast %145 : vector<8x256xf32> to vector<1x8x256xf32>
    %cst_45 = arith.constant dense<0.000000e+00> : vector<1xf32>
    %147 = vector.multi_reduction <add>, %146, %cst_45 [1, 2] : vector<1x8x256xf32> to vector<1xf32>
    %148 = vector.shape_cast %147 : vector<1xf32> to vector<1x1x1xf32>
    %149 = vector.extract %148[0, 0, 0] : f32 from vector<1x1x1xf32>
    %150 = vector.broadcast %149 : f32 to vector<1x1xf32>
    %151 = arith.mulf %145, %145 : vector<8x256xf32>
    %152 = vector.shape_cast %151 : vector<8x256xf32> to vector<1x8x256xf32>
    %cst_46 = arith.constant dense<0.000000e+00> : vector<1xf32>
    %153 = vector.multi_reduction <add>, %152, %cst_46 [1, 2] : vector<1x8x256xf32> to vector<1xf32>
    %154 = vector.shape_cast %153 : vector<1xf32> to vector<1x1x1xf32>
    %155 = vector.extract %154[0, 0, 0] : f32 from vector<1x1x1xf32>
    %156 = vector.broadcast %155 : f32 to vector<1x1xf32>
    %cst_47 = arith.constant 4.8828125E-4 : f32
    %157 = vector.broadcast %cst_47 : f32 to vector<1x1xf32>
    %158 = arith.mulf %150, %157 : vector<1x1xf32>
    %cst_48 = arith.constant 4.8828125E-4 : f32
    %159 = vector.broadcast %cst_48 : f32 to vector<1x1xf32>
    %160 = arith.mulf %156, %159 : vector<1x1xf32>
    %161 = arith.mulf %158, %158 : vector<1x1xf32>
    %162 = arith.subf %160, %161 : vector<1x1xf32>
    %cst_49 = arith.constant 9.99999993E-9 : f32
    %163 = vector.broadcast %cst_49 : f32 to vector<1x1xf32>
    %164 = arith.addf %162, %163 : vector<1x1xf32>
    %165 = math.rsqrt %164 : vector<1x1xf32>
    %166 = vector.shape_cast %165 : vector<1x1xf32> to vector<1x1xf32>
    %167 = vector.broadcast %166 : vector<1x1xf32> to vector<1x256xf32>
    %168 = arith.mulf %158, %165 : vector<1x1xf32>
    %169 = vector.shape_cast %168 : vector<1x1xf32> to vector<1x1xf32>
    %170 = vector.broadcast %169 : vector<1x1xf32> to vector<1x256xf32>
    %171 = tpu.concatenate %141, %167 in 1 : vector<1x256xf32>, vector<1x256xf32> -> vector<1x512xf32>
    %172 = tpu.concatenate %144, %170 in 1 : vector<1x256xf32>, vector<1x256xf32> -> vector<1x512xf32>
    %173 = vector.broadcast %171 : vector<1x512xf32> to vector<8x512xf32>
    %174 = arith.mulf %118, %173 : vector<8x512xf32>
    %175 = vector.broadcast %172 : vector<1x512xf32> to vector<8x512xf32>
    %176 = arith.subf %174, %175 : vector<8x512xf32>
    %c0_50 = arith.constant 0 : index
    %c0_51 = arith.constant 0 : index
    %177 = vector.load %arg9[%c0_50, %c0_51] : memref<4x8xf32, #tpu.memory_space<vmem>>, vector<4x8xf32>
    %cst_52 = arith.constant dense<0.000000e+00> : vector<4x512xf32>
    %178 = tpu.matmul %177, %176, %cst_52 {dimension_numbers = #tpu.dot_dimension_numbers<[1], [0], [0], [1], [0, 0, 1, 1], [], []>} : vector<4x8xf32>, vector<8x512xf32>, vector<4x512xf32> -> vector<4x512xf32>
    %c0_53 = arith.constant 0 : index
    %c0_54 = arith.constant 0 : index
    %179 = vector.load %arg10[%c0_53, %c0_54] : memref<4x1xf32, #tpu.memory_space<vmem>>, vector<4x1xf32>
    %180 = vector.broadcast %179 : vector<4x1xf32> to vector<4x512xf32>
    %181 = arith.addf %178, %180 : vector<4x512xf32>
    %182 = vector.extract_strided_slice %181 {offsets = [0, 0], sizes = [4, 256], strides = [1, 1]} : vector<4x512xf32> to vector<4x256xf32>
    %183 = vector.shape_cast %182 : vector<4x256xf32> to vector<1x4x256xf32>
    %cst_55 = arith.constant dense<0.000000e+00> : vector<1xf32>
    %184 = vector.multi_reduction <add>, %183, %cst_55 [1, 2] : vector<1x4x256xf32> to vector<1xf32>
    %185 = vector.shape_cast %184 : vector<1xf32> to vector<1x1x1xf32>
    %186 = vector.extract %185[0, 0, 0] : f32 from vector<1x1x1xf32>
    %187 = vector.broadcast %186 : f32 to vector<1x1xf32>
    %188 = arith.mulf %182, %182 : vector<4x256xf32>
    %189 = vector.shape_cast %188 : vector<4x256xf32> to vector<1x4x256xf32>
    %cst_56 = arith.constant dense<0.000000e+00> : vector<1xf32>
    %190 = vector.multi_reduction <add>, %189, %cst_56 [1, 2] : vector<1x4x256xf32> to vector<1xf32>
    %191 = vector.shape_cast %190 : vector<1xf32> to vector<1x1x1xf32>
    %192 = vector.extract %191[0, 0, 0] : f32 from vector<1x1x1xf32>
    %193 = vector.broadcast %192 : f32 to vector<1x1xf32>
    %cst_57 = arith.constant 9.765625E-4 : f32
    %194 = vector.broadcast %cst_57 : f32 to vector<1x1xf32>
    %195 = arith.mulf %187, %194 : vector<1x1xf32>
    %cst_58 = arith.constant 9.765625E-4 : f32
    %196 = vector.broadcast %cst_58 : f32 to vector<1x1xf32>
    %197 = arith.mulf %193, %196 : vector<1x1xf32>
    %198 = arith.mulf %195, %195 : vector<1x1xf32>
    %199 = arith.subf %197, %198 : vector<1x1xf32>
    %cst_59 = arith.constant 9.99999993E-9 : f32
    %200 = vector.broadcast %cst_59 : f32 to vector<1x1xf32>
    %201 = arith.addf %199, %200 : vector<1x1xf32>
    %202 = math.rsqrt %201 : vector<1x1xf32>
    %203 = vector.shape_cast %202 : vector<1x1xf32> to vector<1x1xf32>
    %204 = vector.broadcast %203 : vector<1x1xf32> to vector<1x256xf32>
    %205 = arith.mulf %195, %202 : vector<1x1xf32>
    %206 = vector.shape_cast %205 : vector<1x1xf32> to vector<1x1xf32>
    %207 = vector.broadcast %206 : vector<1x1xf32> to vector<1x256xf32>
    %208 = vector.extract_strided_slice %181 {offsets = [0, 256], sizes = [4, 256], strides = [1, 1]} : vector<4x512xf32> to vector<4x256xf32>
    %209 = vector.shape_cast %208 : vector<4x256xf32> to vector<1x4x256xf32>
    %cst_60 = arith.constant dense<0.000000e+00> : vector<1xf32>
    %210 = vector.multi_reduction <add>, %209, %cst_60 [1, 2] : vector<1x4x256xf32> to vector<1xf32>
    %211 = vector.shape_cast %210 : vector<1xf32> to vector<1x1x1xf32>
    %212 = vector.extract %211[0, 0, 0] : f32 from vector<1x1x1xf32>
    %213 = vector.broadcast %212 : f32 to vector<1x1xf32>
    %214 = arith.mulf %208, %208 : vector<4x256xf32>
    %215 = vector.shape_cast %214 : vector<4x256xf32> to vector<1x4x256xf32>
    %cst_61 = arith.constant dense<0.000000e+00> : vector<1xf32>
    %216 = vector.multi_reduction <add>, %215, %cst_61 [1, 2] : vector<1x4x256xf32> to vector<1xf32>
    %217 = vector.shape_cast %216 : vector<1xf32> to vector<1x1x1xf32>
    %218 = vector.extract %217[0, 0, 0] : f32 from vector<1x1x1xf32>
    %219 = vector.broadcast %218 : f32 to vector<1x1xf32>
    %cst_62 = arith.constant 9.765625E-4 : f32
    %220 = vector.broadcast %cst_62 : f32 to vector<1x1xf32>
    %221 = arith.mulf %213, %220 : vector<1x1xf32>
    %cst_63 = arith.constant 9.765625E-4 : f32
    %222 = vector.broadcast %cst_63 : f32 to vector<1x1xf32>
    %223 = arith.mulf %219, %222 : vector<1x1xf32>
    %224 = arith.mulf %221, %221 : vector<1x1xf32>
    %225 = arith.subf %223, %224 : vector<1x1xf32>
    %cst_64 = arith.constant 9.99999993E-9 : f32
    %226 = vector.broadcast %cst_64 : f32 to vector<1x1xf32>
    %227 = arith.addf %225, %226 : vector<1x1xf32>
    %228 = math.rsqrt %227 : vector<1x1xf32>
    %229 = vector.shape_cast %228 : vector<1x1xf32> to vector<1x1xf32>
    %230 = vector.broadcast %229 : vector<1x1xf32> to vector<1x256xf32>
    %231 = arith.mulf %221, %228 : vector<1x1xf32>
    %232 = vector.shape_cast %231 : vector<1x1xf32> to vector<1x1xf32>
    %233 = vector.broadcast %232 : vector<1x1xf32> to vector<1x256xf32>
    %234 = tpu.concatenate %204, %230 in 1 : vector<1x256xf32>, vector<1x256xf32> -> vector<1x512xf32>
    %235 = tpu.concatenate %207, %233 in 1 : vector<1x256xf32>, vector<1x256xf32> -> vector<1x512xf32>
    %c0_65 = arith.constant 0 : index
    %c0_66 = arith.constant 0 : index
    %236 = vector.load %arg11[%c0_65, %c0_66] : memref<4x1xf32, #tpu.memory_space<vmem>>, vector<4x1xf32>
    %237 = vector.broadcast %234 : vector<1x512xf32> to vector<4x512xf32>
    %238 = arith.mulf %181, %237 : vector<4x512xf32>
    %239 = vector.broadcast %235 : vector<1x512xf32> to vector<4x512xf32>
    %240 = arith.subf %238, %239 : vector<4x512xf32>
    %241 = vector.broadcast %236 : vector<4x1xf32> to vector<4x512xf32>
    %242 = arith.mulf %241, %240 : vector<4x512xf32>
    %c0_67 = arith.constant 0 : index
    %c0_68 = arith.constant 0 : index
    %243 = vector.load %arg12[%c0_67, %c0_68] : memref<4x1xf32, #tpu.memory_space<vmem>>, vector<4x1xf32>
    %244 = vector.broadcast %243 : vector<4x1xf32> to vector<4x512xf32>
    %245 = arith.addf %242, %244 : vector<4x512xf32>
    %c0_69 = arith.constant 0 : index
    %c0_70 = arith.constant 0 : index
    %246 = vector.load %arg13[%c0_69, %c0_70] : memref<4x512xf32, #tpu.memory_space<vmem>>, vector<4x512xf32>
    tpu.vector_store %arg13[%c0_69, %c0_70], %245 {strides = array<i32>} : memref<4x512xf32, #tpu.memory_space<vmem>>, vector<4x512xf32>,
    return
  }
}

</mosaic_0001>

<llo_original>
// kernel: multi_scale_conv_block.1
$region0: #{multi_scale_conv_block.1}
  #allocation0 [shape = 'u32[]', space=smem, size = 0x4, offset = 0x4, fixed_abs, tag = 'smem constant byte address 0x4 - core index']
  #allocation1 [shape = 'u32[144,128]{1,0:T(1,128)}', space=vmem, size = 0x12000, scoped, tag = 'internal scratch']
  %s0 = inlined_call_operand.vmem [shape: f32[4,512], index: 0, kind: input, shape index: {}]
  %s1 = inlined_call_operand.vmem [shape: f32[8,4], index: 1, kind: input, shape index: {}]
  %s2 = inlined_call_operand.vmem [shape: f32[8,1], index: 2, kind: input, shape index: {}]
  %s3 = inlined_call_operand.vmem [shape: f32[8,1], index: 3, kind: input, shape index: {}]
  %s4 = inlined_call_operand.vmem [shape: f32[8,1], index: 4, kind: input, shape index: {}]
  %s5 = inlined_call_operand.vmem [shape: f32[8,1], index: 5, kind: input, shape index: {}]
  %s6 = inlined_call_operand.vmem [shape: f32[8,8], index: 6, kind: input, shape index: {}]
  %s7 = inlined_call_operand.vmem [shape: f32[8,1], index: 7, kind: input, shape index: {}]
  %s8 = inlined_call_operand.vmem [shape: f32[8,1], index: 8, kind: input, shape index: {}]
  %s9 = inlined_call_operand.vmem [shape: f32[4,8], index: 9, kind: input, shape index: {}]
  %s10 = inlined_call_operand.vmem [shape: f32[4,1], index: 10, kind: input, shape index: {}]
  %s11 = inlined_call_operand.vmem [shape: f32[4,1], index: 11, kind: input, shape index: {}]
  %s12 = inlined_call_operand.vmem [shape: f32[4,1], index: 12, kind: input, shape index: {}]
  %s13 = inlined_call_operand.vmem [shape: f32[4,512], index: 13, kind: output, shape index: {}]
  %s14 = sld [smem:[#allocation0]]
  $region62: #{multi_scale_conv_block.1} parent=0
    _
  %s16 = ssub.s32 1, %s14
  %s17 = scalar_select 0, %s16, %s14
  // Predicated region
  $region2: #{multi_scale_conv_block.1} parent=0 // pred_check
    _
  $region3: #{multi_scale_conv_block.1} parent=0 // pred_check_branch
    %19 = sbr.rel (0) target = $region5
  $region4: #{multi_scale_conv_block.1} parent=0 // pred_region
    _
  $region5: #{multi_scale_conv_block.1} parent=0 // pred_fallthru
    _
  // Predicated region
  $region6: #{multi_scale_conv_block.1} parent=0 // pred_check
    _
  $region7: #{multi_scale_conv_block.1} parent=0 // pred_check_branch
    %21 = sbr.rel (0) target = $region9
  $region8: #{multi_scale_conv_block.1} parent=0 // pred_region
    _
  $region9: #{multi_scale_conv_block.1} parent=0 // pred_fallthru
    _
  // Predicated region
  $region10: #{multi_scale_conv_block.1} parent=0 // pred_check
    _
  $region11: #{multi_scale_conv_block.1} parent=0 // pred_check_branch
    %23 = sbr.rel (0) target = $region13
  $region12: #{multi_scale_conv_block.1} parent=0 // pred_region
    _
  $region13: #{multi_scale_conv_block.1} parent=0 // pred_fallthru
    _
  // Predicated region
  $region14: #{multi_scale_conv_block.1} parent=0 // pred_check
    _
  $region15: #{multi_scale_conv_block.1} parent=0 // pred_check_branch
    %25 = sbr.rel (0) target = $region17
  $region16: #{multi_scale_conv_block.1} parent=0 // pred_region
    _
  $region17: #{multi_scale_conv_block.1} parent=0 // pred_fallthru
    _
  // Predicated region
  $region18: #{multi_scale_conv_block.1} parent=0 // pred_check
    _
  $region19: #{multi_scale_conv_block.1} parent=0 // pred_check_branch
    %27 = sbr.rel (0) target = $region21
  $region20: #{multi_scale_conv_block.1} parent=0 // pred_region
    _
  $region21: #{multi_scale_conv_block.1} parent=0 // pred_fallthru
    _
  // Predicated region
  $region22: #{multi_scale_conv_block.1} parent=0 // pred_check
    _
  $region23: #{multi_scale_conv_block.1} parent=0 // pred_check_branch
    %29 = sbr.rel (0) target = $region25
  $region24: #{multi_scale_conv_block.1} parent=0 // pred_region
    _
  $region25: #{multi_scale_conv_block.1} parent=0 // pred_fallthru
    _
  // Predicated region
  $region26: #{multi_scale_conv_block.1} parent=0 // pred_check
    _
  $region27: #{multi_scale_conv_block.1} parent=0 // pred_check_branch
    %31 = sbr.rel (0) target = $region29
  $region28: #{multi_scale_conv_block.1} parent=0 // pred_region
    _
  $region29: #{multi_scale_conv_block.1} parent=0 // pred_fallthru
    _
  // Predicated region
  $region30: #{multi_scale_conv_block.1} parent=0 // pred_check
    _
  $region31: #{multi_scale_conv_block.1} parent=0 // pred_check_branch
    %33 = sbr.rel (0) target = $region33
  $region32: #{multi_scale_conv_block.1} parent=0 // pred_region
    _
  $region33: #{multi_scale_conv_block.1} parent=0 // pred_fallthru
    _
  // Predicated region
  $region34: #{multi_scale_conv_block.1} parent=0 // pred_check
    _
  $region35: #{multi_scale_conv_block.1} parent=0 // pred_check_branch
    %35 = sbr.rel (0) target = $region37
  $region36: #{multi_scale_conv_block.1} parent=0 // pred_region
    _
  $region37: #{multi_scale_conv_block.1} parent=0 // pred_fallthru
    _
  // Predicated region
  $region38: #{multi_scale_conv_block.1} parent=0 // pred_check
    _
  $region39: #{multi_scale_conv_block.1} parent=0 // pred_check_branch
    %37 = sbr.rel (0) target = $region41
  $region40: #{multi_scale_conv_block.1} parent=0 // pred_region
    _
  $region41: #{multi_scale_conv_block.1} parent=0 // pred_fallthru
    _
  // Predicated region
  $region42: #{multi_scale_conv_block.1} parent=0 // pred_check
    _
  $region43: #{multi_scale_conv_block.1} parent=0 // pred_check_branch
    %39 = sbr.rel (0) target = $region45
  $region44: #{multi_scale_conv_block.1} parent=0 // pred_region
    _
  $region45: #{multi_scale_conv_block.1} parent=0 // pred_fallthru
    _
  // Predicated region
  $region46: #{multi_scale_conv_block.1} parent=0 // pred_check
    _
  $region47: #{multi_scale_conv_block.1} parent=0 // pred_check_branch
    %41 = sbr.rel (0) target = $region49
  $region48: #{multi_scale_conv_block.1} parent=0 // pred_region
    _
  $region49: #{multi_scale_conv_block.1} parent=0 // pred_fallthru
    _
  // Predicated region
  $region50: #{multi_scale_conv_block.1} parent=0 // pred_check
    _
  $region51: #{multi_scale_conv_block.1} parent=0 // pred_check_branch
    %43 = sbr.rel (0) target = $region53
  $region52: #{multi_scale_conv_block.1} parent=0 // pred_region
    _
  $region53: #{multi_scale_conv_block.1} parent=0 // pred_fallthru
    _
  %v44 = vld [vmem:[%s0] sm:$0xff]
  %v45 = vld [vmem:[%s0 + $0x8] sm:$0xff]
  %v46 = vld [vmem:[%s1] sm:$0xff]
  %v47 = vld [vmem:[%s2] sm:$0xff]
  %49 = vset.pattern.permute.xlu0 0
  %50 = vperm.xlu0 %49, %v47
  %v51 = vpop.permute.xlu0 %50
  %v55 = vcombine.high %v44, %v44
  %v56 = vcombine.high %v45, %v45
  %vm57 = vcmask 31744
  %v59 = vsel %vm57, %v46, 0
  %vm61 = vcmask 1043456
  %v62 = vsel %vm61, %v44, 0
  %v64 = vsel %vm61, %v55, 0
  %v66 = vsel %vm61, %v45, 0
  %v68 = vsel %vm61, %v56, 0
  %70 = vmatprep.subr.mxu0 %v64
  %71 = vmatpush1.msra.mxu0 %v62
  %72 = vmatprep.subr.mxu0 0.0
  %73 = vmatpush1.msra.mxu0 0.0
  %74 = vmatprep.subr.mxu0 0.0
  %75 = vmatpush1.msra.mxu0 0.0
  %76 = vmatprep.subr.mxu0 0.0
  %77 = vmatpush1.msra.mxu0 0.0
  %78 = vmatprep.subr.mxu0 0.0
  %79 = vmatpush1.msra.mxu0 0.0
  %80 = vmatprep.subr.mxu0 0.0
  %81 = vmatpush1.msra.mxu0 0.0
  %82 = vmatprep.subr.mxu0 0.0
  %83 = vmatpush1.msra.mxu0 0.0
  %84 = vmatprep.subr.mxu0 0.0
  %85 = vmatpush1.msra.mxu0 0.0
  %86 = vmatprep.subr.mxu0 0.0
  %87 = vmatpush1.msra.mxu0 0.0
  %88 = vmatprep.subr.mxu0 0.0
  %89 = vmatpush1.msra.mxu0 0.0
  %90 = vmatprep.subr.mxu0 0.0
  %91 = vmatpush1.msra.mxu0 0.0
  %92 = vmatprep.subr.mxu0 0.0
  %93 = vmatpush1.msra.mxu0 0.0
  %94 = vmatprep.subr.mxu0 0.0
  %95 = vmatpush1.msra.mxu0 0.0
  %96 = vmatprep.subr.mxu0 0.0
  %97 = vmatpush1.msra.mxu0 0.0
  %98 = vmatprep.subr.mxu0 0.0
  %99 = vmatpush1.msra.mxu0 0.0
  %100 = vmatprep.subr.mxu0 0.0
  %101 = vmatpush1.msra.mxu0 0.0
  %102 = vmatprep.subr.mxu0 0.0
  %103 = vmatpush1.msra.mxu0 0.0
  %104 = vmatprep.subr.mxu0 0.0
  %105 = vmatpush1.msra.mxu0 0.0
  %106 = vmatprep.subr.mxu0 0.0
  %107 = vmatpush1.msra.mxu0 0.0
  %108 = vmatprep.subr.mxu0 0.0
  %109 = vmatpush1.msra.mxu0 0.0
  %110 = vmatprep.subr.mxu0 0.0
  %111 = vmatpush1.msra.mxu0 0.0
  %112 = vmatprep.subr.mxu0 0.0
  %113 = vmatpush1.msra.mxu0 0.0
  %114 = vmatprep.subr.mxu0 0.0
  %115 = vmatpush1.msra.mxu0 0.0
  %116 = vmatprep.subr.mxu0 0.0
  %117 = vmatpush1.msra.mxu0 0.0
  %118 = vmatprep.subr.mxu0 0.0
  %119 = vmatpush1.msra.mxu0 0.0
  %120 = vmatprep.subr.mxu0 0.0
  %121 = vmatpush1.msra.mxu0 0.0
  %122 = vmatprep.subr.mxu0 0.0
  %123 = vmatpush1.msra.mxu0 0.0
  %124 = vmatprep.subr.mxu0 0.0
  %125 = vmatpush1.msra.mxu0 0.0
  %126 = vmatprep.subr.mxu0 0.0
  %127 = vmatpush1.msra.mxu0 0.0
  %128 = vmatprep.subr.mxu0 0.0
  %129 = vmatpush1.msra.mxu0 0.0
  %130 = vmatprep.subr.mxu0 0.0
  %131 = vmatpush1.msra.mxu0 0.0
  %132 = vmatprep.subr.mxu0 0.0
  %133 = vmatpush1.msra.mxu0 0.0
  %134 = vmatprep.mubr.f32.mxu0 0.0
  %135 = vmatmul.mubr.f32.gmra.mrb[0].mxu0 %v59
  %v136 = vpop.f32.mrb[0].mxu0
  %v137 = vadd.f32 %v51, %v136
  %v138 = vpop.f32.mrb[0].mxu0
  %v139 = vadd.f32 %v51, %v138
  %140 = vdwg.mxu0
  %141 = vmatprep.subr.mxu0 %v68
  %142 = vmatpush1.msra.mxu0 %v66
  %143 = vmatprep.subr.mxu0 0.0
  %144 = vmatpush1.msra.mxu0 0.0
  %145 = vmatprep.subr.mxu0 0.0
  %146 = vmatpush1.msra.mxu0 0.0
  %147 = vmatprep.subr.mxu0 0.0
  %148 = vmatpush1.msra.mxu0 0.0
  %149 = vmatprep.subr.mxu0 0.0
  %150 = vmatpush1.msra.mxu0 0.0
  %151 = vmatprep.subr.mxu0 0.0
  %152 = vmatpush1.msra.mxu0 0.0
  %153 = vmatprep.subr.mxu0 0.0
  %154 = vmatpush1.msra.mxu0 0.0
  %155 = vmatprep.subr.mxu0 0.0
  %156 = vmatpush1.msra.mxu0 0.0
  %157 = vmatprep.subr.mxu0 0.0
  %158 = vmatpush1.msra.mxu0 0.0
  %159 = vmatprep.subr.mxu0 0.0
  %160 = vmatpush1.msra.mxu0 0.0
  %161 = vmatprep.subr.mxu0 0.0
  %162 = vmatpush1.msra.mxu0 0.0
  %163 = vmatprep.subr.mxu0 0.0
  %164 = vmatpush1.msra.mxu0 0.0
  %165 = vmatprep.subr.mxu0 0.0
  %166 = vmatpush1.msra.mxu0 0.0
  %167 = vmatprep.subr.mxu0 0.0
  %168 = vmatpush1.msra.mxu0 0.0
  %169 = vmatprep.subr.mxu0 0.0
  %170 = vmatpush1.msra.mxu0 0.0
  %171 = vmatprep.subr.mxu0 0.0
  %172 = vmatpush1.msra.mxu0 0.0
  %173 = vmatprep.subr.mxu0 0.0
  %174 = vmatpush1.msra.mxu0 0.0
  %175 = vmatprep.subr.mxu0 0.0
  %176 = vmatpush1.msra.mxu0 0.0
  %177 = vmatprep.subr.mxu0 0.0
  %178 = vmatpush1.msra.mxu0 0.0
  %179 = vmatprep.subr.mxu0 0.0
  %180 = vmatpush1.msra.mxu0 0.0
  %181 = vmatprep.subr.mxu0 0.0
  %182 = vmatpush1.msra.mxu0 0.0
  %183 = vmatprep.subr.mxu0 0.0
  %184 = vmatpush1.msra.mxu0 0.0
  %185 = vmatprep.subr.mxu0 0.0
  %186 = vmatpush1.msra.mxu0 0.0
  %187 = vmatprep.subr.mxu0 0.0
  %188 = vmatpush1.msra.mxu0 0.0
  %189 = vmatprep.subr.mxu0 0.0
  %190 = vmatpush1.msra.mxu0 0.0
  %191 = vmatprep.subr.mxu0 0.0
  %192 = vmatpush1.msra.mxu0 0.0
  %193 = vmatprep.subr.mxu0 0.0
  %194 = vmatpush1.msra.mxu0 0.0
  %195 = vmatprep.subr.mxu0 0.0
  %196 = vmatpush1.msra.mxu0 0.0
  %197 = vmatprep.subr.mxu0 0.0
  %198 = vmatpush1.msra.mxu0 0.0
  %199 = vmatprep.subr.mxu0 0.0
  %200 = vmatpush1.msra.mxu0 0.0
  %201 = vmatprep.subr.mxu0 0.0
  %202 = vmatpush1.msra.mxu0 0.0
  %203 = vmatprep.subr.mxu0 0.0
  %204 = vmatpush1.msra.mxu0 0.0
  %205 = vmatprep.mubr.f32.mxu0 0.0
  %206 = vmatmul.mubr.f32.gmra.mrb[0].mxu0 %v59
  %v207 = vpop.f32.mrb[0].mxu0
  %v208 = vadd.f32 %v51, %v207
  %v209 = vpop.f32.mrb[0].mxu0
  %v210 = vadd.f32 %v51, %v209
  %211 = vdwg.mxu0
  %v212 = vadd.f32 %v137, %v139
  %213 = vadd.xlane.f32.xlu0 %v212
  %v214 = vpop.xlane.xlu0 %213
  %v215 = vrot.slane %v214, 4
  %v216 = vadd.f32 %v214, %v215
  %v217 = vrot.slane %v216, 2
  %v218 = vadd.f32 %v216, %v217
  %v219 = vrot.slane %v218, 1
  %v220 = vadd.f32 %v218, %v219
  %s221 = vtos %v220
  %v222 = vstv %s221
  %v223 = vmul.f32 %v137, %v137
  %v224 = vmul.f32 %v139, %v139
  %v225 = vadd.f32 %v223, %v224
  %226 = vadd.xlane.f32.xlu0 %v225
  %v227 = vpop.xlane.xlu0 %226
  %v228 = vrot.slane %v227, 4
  %v229 = vadd.f32 %v227, %v228
  %v230 = vrot.slane %v229, 2
  %v231 = vadd.f32 %v229, %v230
  %v232 = vrot.slane %v231, 1
  %v233 = vadd.f32 %v231, %v232
  %s234 = vtos %v233
  %v235 = vstv %s234
  %v236 = vmul.f32 %v222, 0.00048828125
  %v237 = vmul.f32 %v235, 0.00048828125
  %v238 = vmul.f32 %v236, %v236
  %v239 = vsub.f32 %v237, %v238
  %v240 = vadd.f32 %v239, 1e-08
  %v241 = vrsqrt.pop %v240
  %v242 = vmul.f32 %v236, %v241
  %v243 = vadd.f32 %v208, %v210
  %244 = vadd.xlane.f32.xlu0 %v243
  %v245 = vpop.xlane.xlu0 %244
  %v246 = vrot.slane %v245, 4
  %v247 = vadd.f32 %v245, %v246
  %v248 = vrot.slane %v247, 2
  %v249 = vadd.f32 %v247, %v248
  %v250 = vrot.slane %v249, 1
  %v251 = vadd.f32 %v249, %v250
  %s252 = vtos %v251
  %v253 = vstv %s252
  %v254 = vmul.f32 %v208, %v208
  %v255 = vmul.f32 %v210, %v210
  %v256 = vadd.f32 %v254, %v255
  %257 = vadd.xlane.f32.xlu0 %v256
  %v258 = vpop.xlane.xlu0 %257
  %v259 = vrot.slane %v258, 4
  %v260 = vadd.f32 %v258, %v259
  %v261 = vrot.slane %v260, 2
  %v262 = vadd.f32 %v260, %v261
  %v263 = vrot.slane %v262, 1
  %v264 = vadd.f32 %v262, %v263
  %s265 = vtos %v264
  %v266 = vstv %s265
  %v267 = vmul.f32 %v253, 0.00048828125
  %v268 = vmul.f32 %v266, 0.00048828125
  %v269 = vmul.f32 %v267, %v267
  %v270 = vsub.f32 %v268, %v269
  %v271 = vadd.f32 %v270, 1e-08
  %v272 = vrsqrt.pop %v271
  %v273 = vmul.f32 %v267, %v272
  %v274 = vld [vmem:[%s3] sm:$0xff]
  %v275 = vlaneseq
  %v276 = vshrl.u32 %v275, 7
  %v277 = vsub.s32 0, %v276
  %v278 = vrot.slane %v241, %v277
  %v279 = vlaneseq
  %v280 = vshrl.u32 %v279, 7
  %v281 = vsub.s32 0, %v280
  %v282 = vrot.slane %v272, %v281
  %v283 = vmul.f32 %v137, %v278
  %v284 = vmul.f32 %v139, %v278
  %v285 = vmul.f32 %v208, %v282
  %v286 = vmul.f32 %v210, %v282
  %v287 = vlaneseq
  %v288 = vshrl.u32 %v287, 7
  %v289 = vsub.s32 0, %v288
  %v290 = vrot.slane %v242, %v289
  %v291 = vlaneseq
  %v292 = vshrl.u32 %v291, 7
  %v293 = vsub.s32 0, %v292
  %v294 = vrot.slane %v273, %v293
  %v295 = vsub.f32 %v283, %v290
  %v296 = vsub.f32 %v284, %v290
  %v297 = vsub.f32 %v285, %v294
  %v298 = vsub.f32 %v286, %v294
  %300 = vset.pattern.permute.xlu0 0
  %301 = vperm.xlu0 %300, %v274
  %v302 = vpop.permute.xlu0 %301
  %v304 = vmul.f32 %v302, %v295
  %v305 = vmul.f32 %v302, %v296
  %v306 = vmul.f32 %v302, %v297
  %v307 = vmul.f32 %v302, %v298
  %v308 = vld [vmem:[%s4] sm:$0xff]
  %v309 = vld [vmem:[%s5] sm:$0xff]
  %v310 = vadd.f32 %v304, %v305
  %v311 = vadd.f32 %v310, %v306
  %v312 = vadd.f32 %v311, %v307
  %313 = vadd.xlane.f32.xlu0 %v312
  %v314 = vpop.xlane.xlu0 %313
  %v315 = vmul.f32 %v304, %v304
  %v316 = vmul.f32 %v305, %v305
  %v317 = vmul.f32 %v306, %v306
  %v318 = vmul.f32 %v307, %v307
  %v319 = vadd.f32 %v315, %v316
  %v320 = vadd.f32 %v319, %v317
  %v321 = vadd.f32 %v320, %v318
  %322 = vadd.xlane.f32.xlu0 %v321
  %v323 = vpop.xlane.xlu0 %322
  %v324 = vmul.f32 %v314, 0.001953125
  %v325 = vmul.f32 %v323, 0.001953125
  %v326 = vmul.f32 %v324, %v324
  %v327 = vsub.f32 %v325, %v326
  %v328 = vadd.f32 %v327, 1e-05
  %v329 = vrsqrt.pop %v328
  %v330 = vmul.f32 %v308, %v329
  %v331 = vmul.f32 %v330, %v324
  %v332 = vsub.f32 %v309, %v331
  %334 = vset.pattern.permute.xlu0 0
  %335 = vperm.xlu0 %334, %v330
  %v336 = vpop.permute.xlu0 %335
  %v338 = vmul.f32 %v304, %v336
  %v339 = vmul.f32 %v305, %v336
  %v340 = vmul.f32 %v306, %v336
  %v341 = vmul.f32 %v307, %v336
  %343 = vset.pattern.permute.xlu0 0
  %344 = vperm.xlu0 %343, %v332
  %v345 = vpop.permute.xlu0 %344
  %v347 = vadd.f32 %v338, %v345
  %v348 = vadd.f32 %v339, %v345
  %v349 = vadd.f32 %v340, %v345
  %v350 = vadd.f32 %v341, %v345
  %v351 = vmax.f32 %v347, 0.0
  %v352 = vmax.f32 %v348, 0.0
  %v353 = vmax.f32 %v349, 0.0
  %v354 = vmax.f32 %v350, 0.0
  %v355 = vld [vmem:[%s6] sm:$0xff]
  %vm356 = vcmask 64512
  %v358 = vsel %vm356, %v355, 0
  %360 = vmatprep.subr.mxu0 %v352
  %361 = vmatpush1.msra.mxu0 %v351
  %362 = vmatprep.subr.mxu0 0.0
  %363 = vmatpush1.msra.mxu0 0.0
  %364 = vmatprep.subr.mxu0 0.0
  %365 = vmatpush1.msra.mxu0 0.0
  %366 = vmatprep.subr.mxu0 0.0
  %367 = vmatpush1.msra.mxu0 0.0
  %368 = vmatprep.subr.mxu0 0.0
  %369 = vmatpush1.msra.mxu0 0.0
  %370 = vmatprep.subr.mxu0 0.0
  %371 = vmatpush1.msra.mxu0 0.0
  %372 = vmatprep.subr.mxu0 0.0
  %373 = vmatpush1.msra.mxu0 0.0
  %374 = vmatprep.subr.mxu0 0.0
  %375 = vmatpush1.msra.mxu0 0.0
  %376 = vmatprep.subr.mxu0 0.0
  %377 = vmatpush1.msra.mxu0 0.0
  %378 = vmatprep.subr.mxu0 0.0
  %379 = vmatpush1.msra.mxu0 0.0
  %380 = vmatprep.subr.mxu0 0.0
  %381 = vmatpush1.msra.mxu0 0.0
  %382 = vmatprep.subr.mxu0 0.0
  %383 = vmatpush1.msra.mxu0 0.0
  %384 = vmatprep.subr.mxu0 0.0
  %385 = vmatpush1.msra.mxu0 0.0
  %386 = vmatprep.subr.mxu0 0.0
  %387 = vmatpush1.msra.mxu0 0.0
  %388 = vmatprep.subr.mxu0 0.0
  %389 = vmatpush1.msra.mxu0 0.0
  %390 = vmatprep.subr.mxu0 0.0
  %391 = vmatpush1.msra.mxu0 0.0
  %392 = vmatprep.subr.mxu0 0.0
  %393 = vmatpush1.msra.mxu0 0.0
  %394 = vmatprep.subr.mxu0 0.0
  %395 = vmatpush1.msra.mxu0 0.0
  %396 = vmatprep.subr.mxu0 0.0
  %397 = vmatpush1.msra.mxu0 0.0
  %398 = vmatprep.subr.mxu0 0.0
  %399 = vmatpush1.msra.mxu0 0.0
  %400 = vmatprep.subr.mxu0 0.0
  %401 = vmatpush1.msra.mxu0 0.0
  %402 = vmatprep.subr.mxu0 0.0
  %403 = vmatpush1.msra.mxu0 0.0
  %404 = vmatprep.subr.mxu0 0.0
  %405 = vmatpush1.msra.mxu0 0.0
  %406 = vmatprep.subr.mxu0 0.0
  %407 = vmatpush1.msra.mxu0 0.0
  %408 = vmatprep.subr.mxu0 0.0
  %409 = vmatpush1.msra.mxu0 0.0
  %410 = vmatprep.subr.mxu0 0.0
  %411 = vmatpush1.msra.mxu0 0.0
  %412 = vmatprep.subr.mxu0 0.0
  %413 = vmatpush1.msra.mxu0 0.0
  %414 = vmatprep.subr.mxu0 0.0
  %415 = vmatpush1.msra.mxu0 0.0
  %416 = vmatprep.subr.mxu0 0.0
  %417 = vmatpush1.msra.mxu0 0.0
  %418 = vmatprep.subr.mxu0 0.0
  %419 = vmatpush1.msra.mxu0 0.0
  %420 = vmatprep.subr.mxu0 0.0
  %421 = vmatpush1.msra.mxu0 0.0
  %422 = vmatprep.subr.mxu0 0.0
  %423 = vmatpush1.msra.mxu0 0.0
  %424 = vmatprep.mubr.f32.mxu0 0.0
  %425 = vmatmul.mubr.f32.gmra.mrb[0].mxu0 %v358
  %v426 = vpop.f32.mrb[0].mxu0
  %v427 = vadd.f32 0.0, %v426
  %v428 = vpop.f32.mrb[0].mxu0
  %v429 = vadd.f32 0.0, %v428
  %430 = vdwg.mxu0
  %431 = vmatprep.subr.mxu0 %v354
  %432 = vmatpush1.msra.mxu0 %v353
  %433 = vmatprep.subr.mxu0 0.0
  %434 = vmatpush1.msra.mxu0 0.0
  %435 = vmatprep.subr.mxu0 0.0
  %436 = vmatpush1.msra.mxu0 0.0
  %437 = vmatprep.subr.mxu0 0.0
  %438 = vmatpush1.msra.mxu0 0.0
  %439 = vmatprep.subr.mxu0 0.0
  %440 = vmatpush1.msra.mxu0 0.0
  %441 = vmatprep.subr.mxu0 0.0
  %442 = vmatpush1.msra.mxu0 0.0
  %443 = vmatprep.subr.mxu0 0.0
  %444 = vmatpush1.msra.mxu0 0.0
  %445 = vmatprep.subr.mxu0 0.0
  %446 = vmatpush1.msra.mxu0 0.0
  %447 = vmatprep.subr.mxu0 0.0
  %448 = vmatpush1.msra.mxu0 0.0
  %449 = vmatprep.subr.mxu0 0.0
  %450 = vmatpush1.msra.mxu0 0.0
  %451 = vmatprep.subr.mxu0 0.0
  %452 = vmatpush1.msra.mxu0 0.0
  %453 = vmatprep.subr.mxu0 0.0
  %454 = vmatpush1.msra.mxu0 0.0
  %455 = vmatprep.subr.mxu0 0.0
  %456 = vmatpush1.msra.mxu0 0.0
  %457 = vmatprep.subr.mxu0 0.0
  %458 = vmatpush1.msra.mxu0 0.0
  %459 = vmatprep.subr.mxu0 0.0
  %460 = vmatpush1.msra.mxu0 0.0
  %461 = vmatprep.subr.mxu0 0.0
  %462 = vmatpush1.msra.mxu0 0.0
  %463 = vmatprep.subr.mxu0 0.0
  %464 = vmatpush1.msra.mxu0 0.0
  %465 = vmatprep.subr.mxu0 0.0
  %466 = vmatpush1.msra.mxu0 0.0
  %467 = vmatprep.subr.mxu0 0.0
  %468 = vmatpush1.msra.mxu0 0.0
  %469 = vmatprep.subr.mxu0 0.0
  %470 = vmatpush1.msra.mxu0 0.0
  %471 = vmatprep.subr.mxu0 0.0
  %472 = vmatpush1.msra.mxu0 0.0
  %473 = vmatprep.subr.mxu0 0.0
  %474 = vmatpush1.msra.mxu0 0.0
  %475 = vmatprep.subr.mxu0 0.0
  %476 = vmatpush1.msra.mxu0 0.0
  %477 = vmatprep.subr.mxu0 0.0
  %478 = vmatpush1.msra.mxu0 0.0
  %479 = vmatprep.subr.mxu0 0.0
  %480 = vmatpush1.msra.mxu0 0.0
  %481 = vmatprep.subr.mxu0 0.0
  %482 = vmatpush1.msra.mxu0 0.0
  %483 = vmatprep.subr.mxu0 0.0
  %484 = vmatpush1.msra.mxu0 0.0
  %485 = vmatprep.subr.mxu0 0.0
  %486 = vmatpush1.msra.mxu0 0.0
  %487 = vmatprep.subr.mxu0 0.0
  %488 = vmatpush1.msra.mxu0 0.0
  %489 = vmatprep.subr.mxu0 0.0
  %490 = vmatpush1.msra.mxu0 0.0
  %491 = vmatprep.subr.mxu0 0.0
  %492 = vmatpush1.msra.mxu0 0.0
  %493 = vmatprep.subr.mxu0 0.0
  %494 = vmatpush1.msra.mxu0 0.0
  %495 = vmatprep.mubr.f32.mxu0 0.0
  %496 = vmatmul.mubr.f32.gmra.mrb[0].mxu0 %v358
  %v497 = vpop.f32.mrb[0].mxu0
  %v498 = vadd.f32 0.0, %v497
  %v499 = vpop.f32.mrb[0].mxu0
  %v500 = vadd.f32 0.0, %v499
  %501 = vdwg.mxu0
  %v502 = vld [vmem:[%s7] sm:$0xff]
  %v503 = vld [vmem:[%s8] sm:$0xff]
  %v504 = vadd.f32 %v427, %v429
  %v505 = vadd.f32 %v504, %v498
  %v506 = vadd.f32 %v505, %v500
  %507 = vadd.xlane.f32.xlu0 %v506
  %v508 = vpop.xlane.xlu0 %507
  %v509 = vmul.f32 %v427, %v427
  %v510 = vmul.f32 %v429, %v429
  %v511 = vmul.f32 %v498, %v498
  %v512 = vmul.f32 %v500, %v500
  %v513 = vadd.f32 %v509, %v510
  %v514 = vadd.f32 %v513, %v511
  %v515 = vadd.f32 %v514, %v512
  %516 = vadd.xlane.f32.xlu0 %v515
  %v517 = vpop.xlane.xlu0 %516
  %v518 = vmul.f32 %v508, 0.001953125
  %v519 = vmul.f32 %v517, 0.001953125
  %v520 = vmul.f32 %v518, %v518
  %v521 = vsub.f32 %v519, %v520
  %v522 = vadd.f32 %v521, 1e-05
  %v523 = vrsqrt.pop %v522
  %v524 = vmul.f32 %v502, %v523
  %v525 = vmul.f32 %v524, %v518
  %v526 = vsub.f32 %v503, %v525
  %528 = vset.pattern.permute.xlu0 0
  %529 = vperm.xlu0 %528, %v524
  %v530 = vpop.permute.xlu0 %529
  %v532 = vmul.f32 %v427, %v530
  %v533 = vmul.f32 %v429, %v530
  %v534 = vmul.f32 %v498, %v530
  %v535 = vmul.f32 %v500, %v530
  %537 = vset.pattern.permute.xlu0 0
  %538 = vperm.xlu0 %537, %v526
  %v539 = vpop.permute.xlu0 %538
  %v541 = vadd.f32 %v532, %v539
  %v542 = vadd.f32 %v533, %v539
  %v543 = vadd.f32 %v534, %v539
  %v544 = vadd.f32 %v535, %v539
  %v545 = vmax.f32 %v541, 0.0
  %v546 = vmax.f32 %v542, 0.0
  %v547 = vmax.f32 %v543, 0.0
  %v548 = vmax.f32 %v544, 0.0
  %v549 = vadd.f32 %v545, %v546
  %550 = vadd.xlane.f32.xlu0 %v549
  %v551 = vpop.xlane.xlu0 %550
  %v552 = vrot.slane %v551, 4
  %v553 = vadd.f32 %v551, %v552
  %v554 = vrot.slane %v553, 2
  %v555 = vadd.f32 %v553, %v554
  %v556 = vrot.slane %v555, 1
  %v557 = vadd.f32 %v555, %v556
  %s558 = vtos %v557
  %v559 = vstv %s558
  %v560 = vmul.f32 %v545, %v545
  %v561 = vmul.f32 %v546, %v546
  %v562 = vadd.f32 %v560, %v561
  %563 = vadd.xlane.f32.xlu0 %v562
  %v564 = vpop.xlane.xlu0 %563
  %v565 = vrot.slane %v564, 4
  %v566 = vadd.f32 %v564, %v565
  %v567 = vrot.slane %v566, 2
  %v568 = vadd.f32 %v566, %v567
  %v569 = vrot.slane %v568, 1
  %v570 = vadd.f32 %v568, %v569
  %s571 = vtos %v570
  %v572 = vstv %s571
  %v573 = vmul.f32 %v559, 0.00048828125
  %v574 = vmul.f32 %v572, 0.00048828125
  %v575 = vmul.f32 %v573, %v573
  %v576 = vsub.f32 %v574, %v575
  %v577 = vadd.f32 %v576, 1e-08
  %v578 = vrsqrt.pop %v577
  %v579 = vmul.f32 %v573, %v578
  %v580 = vadd.f32 %v547, %v548
  %581 = vadd.xlane.f32.xlu0 %v580
  %v582 = vpop.xlane.xlu0 %581
  %v583 = vrot.slane %v582, 4
  %v584 = vadd.f32 %v582, %v583
  %v585 = vrot.slane %v584, 2
  %v586 = vadd.f32 %v584, %v585
  %v587 = vrot.slane %v586, 1
  %v588 = vadd.f32 %v586, %v587
  %s589 = vtos %v588
  %v590 = vstv %s589
  %v591 = vmul.f32 %v547, %v547
  %v592 = vmul.f32 %v548, %v548
  %v593 = vadd.f32 %v591, %v592
  %594 = vadd.xlane.f32.xlu0 %v593
  %v595 = vpop.xlane.xlu0 %594
  %v596 = vrot.slane %v595, 4
  %v597 = vadd.f32 %v595, %v596
  %v598 = vrot.slane %v597, 2
  %v599 = vadd.f32 %v597, %v598
  %v600 = vrot.slane %v599, 1
  %v601 = vadd.f32 %v599, %v600
  %s602 = vtos %v601
  %v603 = vstv %s602
  %v604 = vmul.f32 %v590, 0.00048828125
  %v605 = vmul.f32 %v603, 0.00048828125
  %v606 = vmul.f32 %v604, %v604
  %v607 = vsub.f32 %v605, %v606
  %v608 = vadd.f32 %v607, 1e-08
  %v609 = vrsqrt.pop %v608
  %v610 = vmul.f32 %v604, %v609
  %v611 = vlaneseq
  %v612 = vshrl.u32 %v611, 7
  %v613 = vsub.s32 0, %v612
  %v614 = vrot.slane %v578, %v613
  %v615 = vlaneseq
  %v616 = vshrl.u32 %v615, 7
  %v617 = vsub.s32 0, %v616
  %v618 = vrot.slane %v609, %v617
  %v619 = vmul.f32 %v545, %v614
  %v620 = vmul.f32 %v546, %v614
  %v621 = vmul.f32 %v547, %v618
  %v622 = vmul.f32 %v548, %v618
  %v623 = vlaneseq
  %v624 = vshrl.u32 %v623, 7
  %v625 = vsub.s32 0, %v624
  %v626 = vrot.slane %v579, %v625
  %v627 = vlaneseq
  %v628 = vshrl.u32 %v627, 7
  %v629 = vsub.s32 0, %v628
  %v630 = vrot.slane %v610, %v629
  %v631 = vsub.f32 %v619, %v626
  %v632 = vsub.f32 %v620, %v626
  %v633 = vsub.f32 %v621, %v630
  %v634 = vsub.f32 %v622, %v630
  %v635 = vld [vmem:[%s9] sm:$0xf]
  %v636 = vld [vmem:[%s10] sm:$0xf]
  %638 = vset.pattern.permute.xlu0 0
  %639 = vperm.xlu0 %638, %v636
  %v640 = vpop.permute.xlu0 %639
  %v643 = vsel %vm356, %v635, 0
  %645 = vmatprep.subr.mxu0 %v632
  %646 = vmatpush1.msra.mxu0 %v631
  %647 = vmatprep.subr.mxu0 0.0
  %648 = vmatpush1.msra.mxu0 0.0
  %649 = vmatprep.subr.mxu0 0.0
  %650 = vmatpush1.msra.mxu0 0.0
  %651 = vmatprep.subr.mxu0 0.0
  %652 = vmatpush1.msra.mxu0 0.0
  %653 = vmatprep.subr.mxu0 0.0
  %654 = vmatpush1.msra.mxu0 0.0
  %655 = vmatprep.subr.mxu0 0.0
  %656 = vmatpush1.msra.mxu0 0.0
  %657 = vmatprep.subr.mxu0 0.0
  %658 = vmatpush1.msra.mxu0 0.0
  %659 = vmatprep.subr.mxu0 0.0
  %660 = vmatpush1.msra.mxu0 0.0
  %661 = vmatprep.subr.mxu0 0.0
  %662 = vmatpush1.msra.mxu0 0.0
  %663 = vmatprep.subr.mxu0 0.0
  %664 = vmatpush1.msra.mxu0 0.0
  %665 = vmatprep.subr.mxu0 0.0
  %666 = vmatpush1.msra.mxu0 0.0
  %667 = vmatprep.subr.mxu0 0.0
  %668 = vmatpush1.msra.mxu0 0.0
  %669 = vmatprep.subr.mxu0 0.0
  %670 = vmatpush1.msra.mxu0 0.0
  %671 = vmatprep.subr.mxu0 0.0
  %672 = vmatpush1.msra.mxu0 0.0
  %673 = vmatprep.subr.mxu0 0.0
  %674 = vmatpush1.msra.mxu0 0.0
  %675 = vmatprep.subr.mxu0 0.0
  %676 = vmatpush1.msra.mxu0 0.0
  %677 = vmatprep.subr.mxu0 0.0
  %678 = vmatpush1.msra.mxu0 0.0
  %679 = vmatprep.subr.mxu0 0.0
  %680 = vmatpush1.msra.mxu0 0.0
  %681 = vmatprep.subr.mxu0 0.0
  %682 = vmatpush1.msra.mxu0 0.0
  %683 = vmatprep.subr.mxu0 0.0
  %684 = vmatpush1.msra.mxu0 0.0
  %685 = vmatprep.subr.mxu0 0.0
  %686 = vmatpush1.msra.mxu0 0.0
  %687 = vmatprep.subr.mxu0 0.0
  %688 = vmatpush1.msra.mxu0 0.0
  %689 = vmatprep.subr.mxu0 0.0
  %690 = vmatpush1.msra.mxu0 0.0
  %691 = vmatprep.subr.mxu0 0.0
  %692 = vmatpush1.msra.mxu0 0.0
  %693 = vmatprep.subr.mxu0 0.0
  %694 = vmatpush1.msra.mxu0 0.0
  %695 = vmatprep.subr.mxu0 0.0
  %696 = vmatpush1.msra.mxu0 0.0
  %697 = vmatprep.subr.mxu0 0.0
  %698 = vmatpush1.msra.mxu0 0.0
  %699 = vmatprep.subr.mxu0 0.0
  %700 = vmatpush1.msra.mxu0 0.0
  %701 = vmatprep.subr.mxu0 0.0
  %702 = vmatpush1.msra.mxu0 0.0
  %703 = vmatprep.subr.mxu0 0.0
  %704 = vmatpush1.msra.mxu0 0.0
  %705 = vmatprep.subr.mxu0 0.0
  %706 = vmatpush1.msra.mxu0 0.0
  %707 = vmatprep.subr.mxu0 0.0
  %708 = vmatpush1.msra.mxu0 0.0
  %709 = vmatprep.mubr.f32.mxu0 0.0
  %710 = vmatmul.mubr.f32.gmra.mrb[0].mxu0 %v643
  %v711 = vpop.f32.mrb[0].mxu0
  %v712 = vadd.f32 %v640, %v711
  %v713 = vpop.f32.mrb[0].mxu0
  %v714 = vadd.f32 %v640, %v713
  %715 = vdwg.mxu0
  %716 = vmatprep.subr.mxu0 %v634
  %717 = vmatpush1.msra.mxu0 %v633
  %718 = vmatprep.subr.mxu0 0.0
  %719 = vmatpush1.msra.mxu0 0.0
  %720 = vmatprep.subr.mxu0 0.0
  %721 = vmatpush1.msra.mxu0 0.0
  %722 = vmatprep.subr.mxu0 0.0
  %723 = vmatpush1.msra.mxu0 0.0
  %724 = vmatprep.subr.mxu0 0.0
  %725 = vmatpush1.msra.mxu0 0.0
  %726 = vmatprep.subr.mxu0 0.0
  %727 = vmatpush1.msra.mxu0 0.0
  %728 = vmatprep.subr.mxu0 0.0
  %729 = vmatpush1.msra.mxu0 0.0
  %730 = vmatprep.subr.mxu0 0.0
  %731 = vmatpush1.msra.mxu0 0.0
  %732 = vmatprep.subr.mxu0 0.0
  %733 = vmatpush1.msra.mxu0 0.0
  %734 = vmatprep.subr.mxu0 0.0
  %735 = vmatpush1.msra.mxu0 0.0
  %736 = vmatprep.subr.mxu0 0.0
  %737 = vmatpush1.msra.mxu0 0.0
  %738 = vmatprep.subr.mxu0 0.0
  %739 = vmatpush1.msra.mxu0 0.0
  %740 = vmatprep.subr.mxu0 0.0
  %741 = vmatpush1.msra.mxu0 0.0
  %742 = vmatprep.subr.mxu0 0.0
  %743 = vmatpush1.msra.mxu0 0.0
  %744 = vmatprep.subr.mxu0 0.0
  %745 = vmatpush1.msra.mxu0 0.0
  %746 = vmatprep.subr.mxu0 0.0
  %747 = vmatpush1.msra.mxu0 0.0
  %748 = vmatprep.subr.mxu0 0.0
  %749 = vmatpush1.msra.mxu0 0.0
  %750 = vmatprep.subr.mxu0 0.0
  %751 = vmatpush1.msra.mxu0 0.0
  %752 = vmatprep.subr.mxu0 0.0
  %753 = vmatpush1.msra.mxu0 0.0
  %754 = vmatprep.subr.mxu0 0.0
  %755 = vmatpush1.msra.mxu0 0.0
  %756 = vmatprep.subr.mxu0 0.0
  %757 = vmatpush1.msra.mxu0 0.0
  %758 = vmatprep.subr.mxu0 0.0
  %759 = vmatpush1.msra.mxu0 0.0
  %760 = vmatprep.subr.mxu0 0.0
  %761 = vmatpush1.msra.mxu0 0.0
  %762 = vmatprep.subr.mxu0 0.0
  %763 = vmatpush1.msra.mxu0 0.0
  %764 = vmatprep.subr.mxu0 0.0
  %765 = vmatpush1.msra.mxu0 0.0
  %766 = vmatprep.subr.mxu0 0.0
  %767 = vmatpush1.msra.mxu0 0.0
  %768 = vmatprep.subr.mxu0 0.0
  %769 = vmatpush1.msra.mxu0 0.0
  %770 = vmatprep.subr.mxu0 0.0
  %771 = vmatpush1.msra.mxu0 0.0
  %772 = vmatprep.subr.mxu0 0.0
  %773 = vmatpush1.msra.mxu0 0.0
  %774 = vmatprep.subr.mxu0 0.0
  %775 = vmatpush1.msra.mxu0 0.0
  %776 = vmatprep.subr.mxu0 0.0
  %777 = vmatpush1.msra.mxu0 0.0
  %778 = vmatprep.subr.mxu0 0.0
  %779 = vmatpush1.msra.mxu0 0.0
  %780 = vmatprep.mubr.f32.mxu0 0.0
  %781 = vmatmul.mubr.f32.gmra.mrb[0].mxu0 %v643
  %v782 = vpop.f32.mrb[0].mxu0
  %v783 = vadd.f32 %v640, %v782
  %v784 = vpop.f32.mrb[0].mxu0
  %v785 = vadd.f32 %v640, %v784
  %786 = vdwg.mxu0
  %v787 = vsel %vm61, %v712, 0.0
  %v788 = vsel %vm61, %v714, 0.0
  %v789 = vadd.f32 %v787, %v788
  %790 = vadd.xlane.f32.xlu0 %v789
  %v791 = vpop.xlane.xlu0 %790
  %v792 = vrot.slane %v791, 4
  %v793 = vadd.f32 %v791, %v792
  %v794 = vrot.slane %v793, 2
  %v795 = vadd.f32 %v793, %v794
  %v796 = vrot.slane %v795, 1
  %v797 = vadd.f32 %v795, %v796
  %s798 = vtos %v797
  %v799 = vstv %s798
  %v800 = vmul.f32 %v712, %v712
  %v801 = vmul.f32 %v714, %v714
  %v802 = vsel %vm61, %v800, 0.0
  %v803 = vsel %vm61, %v801, 0.0
  %v804 = vadd.f32 %v802, %v803
  %805 = vadd.xlane.f32.xlu0 %v804
  %v806 = vpop.xlane.xlu0 %805
  %v807 = vrot.slane %v806, 4
  %v808 = vadd.f32 %v806, %v807
  %v809 = vrot.slane %v808, 2
  %v810 = vadd.f32 %v808, %v809
  %v811 = vrot.slane %v810, 1
  %v812 = vadd.f32 %v810, %v811
  %s813 = vtos %v812
  %v814 = vstv %s813
  %v815 = vmul.f32 %v799, 0.0009765625
  %v816 = vmul.f32 %v814, 0.0009765625
  %v817 = vmul.f32 %v815, %v815
  %v818 = vsub.f32 %v816, %v817
  %v819 = vadd.f32 %v818, 1e-08
  %v820 = vrsqrt.pop %v819
  %v821 = vmul.f32 %v815, %v820
  %v822 = vsel %vm61, %v783, 0.0
  %v823 = vsel %vm61, %v785, 0.0
  %v824 = vadd.f32 %v822, %v823
  %825 = vadd.xlane.f32.xlu0 %v824
  %v826 = vpop.xlane.xlu0 %825
  %v827 = vrot.slane %v826, 4
  %v828 = vadd.f32 %v826, %v827
  %v829 = vrot.slane %v828, 2
  %v830 = vadd.f32 %v828, %v829
  %v831 = vrot.slane %v830, 1
  %v832 = vadd.f32 %v830, %v831
  %s833 = vtos %v832
  %v834 = vstv %s833
  %v835 = vmul.f32 %v783, %v783
  %v836 = vmul.f32 %v785, %v785
  %v837 = vsel %vm61, %v835, 0.0
  %v838 = vsel %vm61, %v836, 0.0
  %v839 = vadd.f32 %v837, %v838
  %840 = vadd.xlane.f32.xlu0 %v839
  %v841 = vpop.xlane.xlu0 %840
  %v842 = vrot.slane %v841, 4
  %v843 = vadd.f32 %v841, %v842
  %v844 = vrot.slane %v843, 2
  %v845 = vadd.f32 %v843, %v844
  %v846 = vrot.slane %v845, 1
  %v847 = vadd.f32 %v845, %v846
  %s848 = vtos %v847
  %v849 = vstv %s848
  %v850 = vmul.f32 %v834, 0.0009765625
  %v851 = vmul.f32 %v849, 0.0009765625
  %v852 = vmul.f32 %v850, %v850
  %v853 = vsub.f32 %v851, %v852
  %v854 = vadd.f32 %v853, 1e-08
  %v855 = vrsqrt.pop %v854
  %v856 = vmul.f32 %v850, %v855
  %v857 = vld [vmem:[%s11] sm:$0xf]
  %v858 = vlaneseq
  %v859 = vshrl.u32 %v858, 7
  %v860 = vsub.s32 0, %v859
  %v861 = vrot.slane %v820, %v860
  %v862 = vlaneseq
  %v863 = vshrl.u32 %v862, 7
  %v864 = vsub.s32 0, %v863
  %v865 = vrot.slane %v855, %v864
  %v866 = vmul.f32 %v712, %v861
  %v867 = vmul.f32 %v714, %v861
  %v868 = vmul.f32 %v783, %v865
  %v869 = vmul.f32 %v785, %v865
  %v870 = vlaneseq
  %v871 = vshrl.u32 %v870, 7
  %v872 = vsub.s32 0, %v871
  %v873 = vrot.slane %v821, %v872
  %v874 = vlaneseq
  %v875 = vshrl.u32 %v874, 7
  %v876 = vsub.s32 0, %v875
  %v877 = vrot.slane %v856, %v876
  %v878 = vsub.f32 %v866, %v873
  %v879 = vsub.f32 %v867, %v873
  %v880 = vsub.f32 %v868, %v877
  %v881 = vsub.f32 %v869, %v877
  %883 = vset.pattern.permute.xlu0 0
  %884 = vperm.xlu0 %883, %v857
  %v885 = vpop.permute.xlu0 %884
  %v887 = vmul.f32 %v885, %v878
  %v888 = vmul.f32 %v885, %v879
  %v889 = vmul.f32 %v885, %v880
  %v890 = vmul.f32 %v885, %v881
  %v891 = vld [vmem:[%s12] sm:$0xf]
  %893 = vset.pattern.permute.xlu0 0
  %894 = vperm.xlu0 %893, %v891
  %v895 = vpop.permute.xlu0 %894
  %v897 = vadd.f32 %v887, %v895
  %v898 = vadd.f32 %v888, %v895
  %v899 = vadd.f32 %v889, %v895
  %v900 = vadd.f32 %v890, %v895
  %v905 = vcombine.low %v897, %v898
  %v906 = vcombine.low %v899, %v900
  %909 = vst [vmem:[%s13] sm:$0xff] %v905
  %910 = vst [vmem:[%s13 + $0x8] sm:$0xff] %v906
  // Predicated region
  $region54: #{multi_scale_conv_block.1} parent=0 // pred_check
    _
  $region55: #{multi_scale_conv_block.1} parent=0 // pred_check_branch
    %912 = sbr.rel (0) target = $region57
  $region56: #{multi_scale_conv_block.1} parent=0 // pred_region
    _
  $region57: #{multi_scale_conv_block.1} parent=0 // pred_fallthru
    _
  // Predicated region
  $region58: #{multi_scale_conv_block.1} parent=0 // pred_check
    _
  $region59: #{multi_scale_conv_block.1} parent=0 // pred_check_branch
    %914 = sbr.rel (0) target = $region61
  $region60: #{multi_scale_conv_block.1} parent=0 // pred_region
    _
  $region61: #{multi_scale_conv_block.1} parent=0 // pred_fallthru
    _

</llo_original>
